<compile_context>
chip_gen: v5e
topology: v5e:2x2
jax: 0.10.0
libtpu: 0.0.40
codegen_flags: <defaults>
</compile_context>

<pallas_src>
import functools
import math

import jax
import jax.numpy as jnp
from jax.experimental import pallas as pl
from jax.experimental.pallas import tpu as pltpu


# ----------------------------------------------------------------------------
# helpers
# ----------------------------------------------------------------------------

def _tile(dim, desired, align):
    """Largest block <= desired that divides `dim`, preferring multiples of
    256 (v6e/v7x MXU width), then `align`; falls back to the full dim."""
    if dim <= desired:
        return dim
    for a in sorted({max(align, 256), align}, reverse=True):
        t = (desired // a) * a
        while t >= a:
            if dim % t == 0:
                return t
            t -= a
    return dim


@functools.lru_cache(maxsize=None)
def _vmem_limit():
    """Generation-aware scoped-VMEM limit: half of physical VMEM, capped at
    64 MiB (=> 64 MiB on v5e/v6e, 32 MiB on v7x)."""
    try:
        cap = pltpu.get_tpu_info().vmem_capacity_bytes
    except Exception:
        cap = 64 * 1024 * 1024
    return min(cap // 2, 64 * 1024 * 1024)


def _head_block(n_heads, head_dim):
    """Smallest head block whose lane width (hb * head_dim) is a multiple of
    128 (lane-dense blocks); falls back to all heads (full last dim)."""
    for hb in range(1, n_heads + 1):
        if n_heads % hb == 0 and (hb * head_dim) % 128 == 0:
            return hb
    return n_heads


# ----------------------------------------------------------------------------
# Pallas kernels
# ----------------------------------------------------------------------------

def _matmul_bias_kernel(x_ref, w_ref, b_ref, o_ref, acc_ref, *, activation):
    """o = act(x @ w + b), tiled over (M, N, K) with a f32 accumulator."""
    @pl.when(pl.program_id(2) == 0)
    def _():
        acc_ref[...] = jnp.zeros_like(acc_ref)

    acc_ref[...] += jnp.dot(
        x_ref[...].astype(jnp.bfloat16),
        w_ref[...].astype(jnp.bfloat16),
        preferred_element_type=jnp.float32)

    @pl.when(pl.program_id(2) == pl.num_programs(2) - 1)
    def _():
        y = acc_ref[...] + b_ref[...]
        if activation == "gelu":
            # TODO(synk): HF BERT uses erf-exact GELU; tanh approximation is
            # used here (guaranteed EUP lowering in Mosaic).
            c = math.sqrt(2.0 / math.pi)
            y = 0.5 * y * (1.0 + jnp.tanh(c * (y + 0.044715 * y * y * y)))
        o_ref[...] = y.astype(o_ref.dtype)


def matmul_bias(x, w, b, activation=None, out_dtype=jnp.bfloat16,
                tm=512, tn=1024, tk=512):
    M, K = x.shape
    _, N = w.shape
    tm = _tile(M, tm, 8)
    tn = _tile(N, tn, 128)
    tk = _tile(K, tk, 128)
    return pl.pallas_call(
        functools.partial(_matmul_bias_kernel, activation=activation),
        out_shape=jax.ShapeDtypeStruct((M, N), out_dtype),
        grid=(M // tm, N // tn, K // tk),
        in_specs=[
            pl.BlockSpec((tm, tk), lambda i, j, k: (i, k)),
            pl.BlockSpec((tk, tn), lambda i, j, k: (k, j)),
            pl.BlockSpec((1, tn), lambda i, j, k: (0, j)),
        ],
        out_specs=pl.BlockSpec((tm, tn), lambda i, j, k: (i, j)),
        scratch_shapes=[pltpu.VMEM((tm, tn), jnp.float32)],
        compiler_params=pltpu.CompilerParams(
            dimension_semantics=("parallel", "parallel", "arbitrary"),
            vmem_limit_bytes=_vmem_limit()),
    )(x, w, b.reshape(1, N))


def _matmul_add_ln_kernel(x_ref, w_ref, b_ref, r_ref, g_ref, be_ref,
                          o_ref, acc_ref, *, eps):
    """o = layernorm((x @ w + b) + residual) * g + be   (full-N per tile)."""
    @pl.when(pl.program_id(1) == 0)
    def _():
        acc_ref[...] = jnp.zeros_like(acc_ref)

    acc_ref[...] += jnp.dot(
        x_ref[...].astype(jnp.bfloat16),
        w_ref[...].astype(jnp.bfloat16),
        preferred_element_type=jnp.float32)

    @pl.when(pl.program_id(1) == pl.num_programs(1) - 1)
    def _():
        y = acc_ref[...] + b_ref[...] + r_ref[...].astype(jnp.float32)
        mean = jnp.mean(y, axis=-1, keepdims=True)
        yc = y - mean
        var = jnp.mean(yc * yc, axis=-1, keepdims=True)
        z = yc * jax.lax.rsqrt(var + eps)
        o_ref[...] = (z * g_ref[...] + be_ref[...]).astype(o_ref.dtype)


def matmul_add_layernorm(x, w, b, residual, gamma, beta,
                         eps=1e-12, out_dtype=jnp.bfloat16, tm=512, tk=512):
    M, K = x.shape
    _, N = w.shape
    tm = _tile(M, tm, 8)
    tk = _tile(K, tk, 128)
    return pl.pallas_call(
        functools.partial(_matmul_add_ln_kernel, eps=eps),
        out_shape=jax.ShapeDtypeStruct((M, N), out_dtype),
        grid=(M // tm, K // tk),
        in_specs=[
            pl.BlockSpec((tm, tk), lambda i, k: (i, k)),
            pl.BlockSpec((tk, N), lambda i, k: (k, 0)),
            pl.BlockSpec((1, N), lambda i, k: (0, 0)),
            pl.BlockSpec((tm, N), lambda i, k: (i, 0)),
            pl.BlockSpec((1, N), lambda i, k: (0, 0)),
            pl.BlockSpec((1, N), lambda i, k: (0, 0)),
        ],
        out_specs=pl.BlockSpec((tm, N), lambda i, k: (i, 0)),
        scratch_shapes=[pltpu.VMEM((tm, N), jnp.float32)],
        compiler_params=pltpu.CompilerParams(
            dimension_semantics=("parallel", "arbitrary"),
            vmem_limit_bytes=_vmem_limit()),
    )(x, w, b.reshape(1, N), residual, gamma.reshape(1, N), beta.reshape(1, N))


def _layernorm_kernel(x_ref, g_ref, b_ref, o_ref, *, eps):
    x = x_ref[...].astype(jnp.float32)
    mean = jnp.mean(x, axis=-1, keepdims=True)
    xc = x - mean
    var = jnp.mean(xc * xc, axis=-1, keepdims=True)
    y = xc * jax.lax.rsqrt(var + eps)
    o_ref[...] = (y * g_ref[...] + b_ref[...]).astype(o_ref.dtype)


def layernorm(x, gamma, beta, eps=1e-12, out_dtype=jnp.bfloat16, tm=512):
    M, H = x.shape
    tm = _tile(M, tm, 8)
    return pl.pallas_call(
        functools.partial(_layernorm_kernel, eps=eps),
        out_shape=jax.ShapeDtypeStruct((M, H), out_dtype),
        grid=(M // tm,),
        in_specs=[
            pl.BlockSpec((tm, H), lambda i: (i, 0)),
            pl.BlockSpec((1, H), lambda i: (0, 0)),
            pl.BlockSpec((1, H), lambda i: (0, 0)),
        ],
        out_specs=pl.BlockSpec((tm, H), lambda i: (i, 0)),
        compiler_params=pltpu.CompilerParams(
            dimension_semantics=("parallel",)),
    )(x, gamma.reshape(1, H), beta.reshape(1, H))


def _attention_kernel(q_ref, k_ref, v_ref, m_ref, o_ref, *, scale, head_dim, hb):
    """One (batch, head-block) tile.  Q/K/V arrive in (1, S, hb*D) lane
    layout straight from the QKV projection (no HBM transposes); output is
    written lane-dense into the (B, S, H) context tensor."""
    mask = m_ref[0]                                    # (1, S) additive bias
    for h in range(hb):                                # small static unroll
        sl = slice(h * head_dim, (h + 1) * head_dim)
        # fold 1/sqrt(d) into Q: a multiply over (S, D), not (S, S)
        qh = (q_ref[0, :, sl].astype(jnp.float32) * scale).astype(jnp.bfloat16)
        kh = k_ref[0, :, sl]                           # (S, D) bf16
        vh = v_ref[0, :, sl]                           # (S, D) bf16
        s = jax.lax.dot_general(qh, kh, (((1,), (1,)), ((), ())),
                                preferred_element_type=jnp.float32)  # (S, S)
        s = s + mask
        s_max = jnp.max(s, axis=-1, keepdims=True)
        p = jnp.exp(s - s_max)
        l = jnp.sum(p, axis=-1, keepdims=True)         # f32 (S, 1)
        ctx = jnp.dot(p.astype(jnp.bfloat16), vh,
                      preferred_element_type=jnp.float32)            # (S, D)
        # normalize AFTER the PV matmul: (S, D) elements, not (S, S)
        ctx = ctx * pl.reciprocal(l, approx=True)
        o_ref[0, :, sl] = ctx.astype(o_ref.dtype)


def attention(q, k, v, mask_bias, scale, n_heads):
    """q, k, v: (B, S, H) bf16 (heads contiguous along H); mask: (B, 1, S).
    Returns the context in (B, S, H) layout (no head merge transpose)."""
    # TODO(synk): for long sequences (S >= 512) switch to a KV-tiled
    # online-softmax (flash) variant to cap the (S, S) score block.
    B, S, H = q.shape
    D = H // n_heads
    hb = _head_block(n_heads, D)
    hbd = hb * D
    return pl.pallas_call(
        functools.partial(_attention_kernel, scale=scale, head_dim=D, hb=hb),
        out_shape=jax.ShapeDtypeStruct((B, S, H), jnp.bfloat16),
        grid=(B, n_heads // hb),
        in_specs=[
            pl.BlockSpec((1, S, hbd), lambda b, h: (b, 0, h)),
            pl.BlockSpec((1, S, hbd), lambda b, h: (b, 0, h)),
            pl.BlockSpec((1, S, hbd), lambda b, h: (b, 0, h)),
            pl.BlockSpec((1, 1, S), lambda b, h: (b, 0, 0)),
        ],
        out_specs=pl.BlockSpec((1, S, hbd), lambda b, h: (b, 0, h)),
        compiler_params=pltpu.CompilerParams(
            dimension_semantics=("parallel", "parallel"),
            vmem_limit_bytes=_vmem_limit()),
    )(q, k, v, mask_bias)


# ----------------------------------------------------------------------------
# Model (BERT encoder + fc1 + output head), built from the kernels above
# ----------------------------------------------------------------------------

def bert_layer(x, mask_bias, p, n_heads):
    B, S, H = x.shape
    d = H // n_heads
    xf = x.reshape(B * S, H)                              # bf16

    # fused QKV projection: one (H, 3H) matmul instead of three (H, H)
    qkv = matmul_bias(xf, p["wqkv"], p["bqkv"])           # (B*S, 3H) bf16
    q, k, v = jnp.split(qkv.reshape(B, S, 3 * H), 3, axis=-1)

    # attention consumes/produces (B, S, H) directly -> no head split/merge
    # or K pre-transpose at HBM level.
    ctx = attention(q, k, v, mask_bias, 1.0 / math.sqrt(d), n_heads)
    ctx = ctx.reshape(B * S, H)

    # attention output projection fused with residual-add + layernorm
    x1 = matmul_add_layernorm(ctx, p["wo"], p["bo"], xf,
                              p["ln1_g"], p["ln1_b"])
    # feed-forward up-projection (GELU) + down-projection fused with add+LN
    inter = matmul_bias(x1, p["wi"], p["bi"], activation="gelu")
    x2 = matmul_add_layernorm(inter, p["wf"], p["bf"], x1,
                              p["ln2_g"], p["ln2_b"])
    return x2.reshape(B, S, H)


def question_bert_forward(params, input_ids, token_type_ids, attention_mask, cfg):
    B, S = input_ids.shape
    H = cfg["bert_hidden"]

    # --- BERT embeddings (gathers are JAX glue, LN is a Pallas kernel) ---
    word = jnp.take(params["word_emb"], input_ids, axis=0)          # (B,S,H)
    pos = params["pos_emb"][:S][None, :, :]                         # (1,S,H)
    typ = jnp.take(params["type_emb"], token_type_ids, axis=0)      # (B,S,H)
    emb = (word + pos + typ).reshape(B * S, H)
    x = layernorm(emb, params["emb_ln_g"], params["emb_ln_b"]).reshape(B, S, H)

    # additive attention-mask bias, BERT style: (1 - mask) * -10000
    mask_bias = ((1.0 - attention_mask.astype(jnp.float32)) * -10000.0) \
        .reshape(B, 1, S)

    # --- encoder layers ---
    for lp in params["layers"]:
        x = bert_layer(x, mask_bias, lp, cfg["n_heads"])

    first_hidden_states = x[:, 0, :].astype(jnp.float32)   # (B, H) CLS token

    # --- classification head (N=16, N=2): tiny lane-sparse GEMMs, left to
    # plain JAX/XLA rather than a Pallas kernel.  Dropout = identity at eval.
    fc1 = jnp.dot(first_hidden_states, params["fc1_w"]) + params["fc1_b"]
    out = jnp.dot(fc1, params["out_w"]) + params["out_b"]             # (B, 2)
    return out[:, 0]                                                  # (B,)


# ----------------------------------------------------------------------------
# Deterministic parameter init (weights stored bf16 for MXU / DMA efficiency)
# ----------------------------------------------------------------------------

def init_params(key, cfg):
    H, I, nl = cfg["bert_hidden"], cfg["intermediate"], cfg["n_layers"]

    def nrm(k, shape, dtype=jnp.float32):
        return (0.02 * jax.random.normal(k, shape, dtype=jnp.float32)).astype(dtype)

    keys = iter(jax.random.split(key, 8 + 8 * nl))
    params = {
        "word_emb": nrm(next(keys), (cfg["vocab"], H)),
        "pos_emb": nrm(next(keys), (cfg["max_pos"], H)),
        "type_emb": nrm(next(keys), (cfg["type_vocab"], H)),
        "emb_ln_g": jnp.ones((H,), jnp.float32),
        "emb_ln_b": jnp.zeros((H,), jnp.float32),
        "layers": [],
    }
    for _ in range(nl):
        lp = {
            "wqkv": nrm(next(keys), (H, 3 * H), jnp.bfloat16),
            "bqkv": jnp.zeros((3 * H,), jnp.float32),
            "wo": nrm(next(keys), (H, H), jnp.bfloat16),
            "bo": jnp.zeros((H,), jnp.float32),
            "ln1_g": jnp.ones((H,), jnp.float32),
            "ln1_b": jnp.zeros((H,), jnp.float32),
            "wi": nrm(next(keys), (H, I), jnp.bfloat16),
            "bi": jnp.zeros((I,), jnp.float32),
            "wf": nrm(next(keys), (I, H), jnp.bfloat16),
            "bf": jnp.zeros((H,), jnp.float32),
            "ln2_g": jnp.ones((H,), jnp.float32),
            "ln2_b": jnp.zeros((H,), jnp.float32),
        }
        params["layers"].append(lp)

    params["fc1_w"] = nrm(next(keys), (H, cfg["head_hidden"]))
    params["fc1_b"] = jnp.zeros((cfg["head_hidden"],), jnp.float32)
    params["out_w"] = nrm(next(keys), (cfg["head_hidden"], 2))
    params["out_b"] = jnp.zeros((2,), jnp.float32)
    return params


# ----------------------------------------------------------------------------
# Main
# ----------------------------------------------------------------------------

if __name__ == "__main__":
    cfg = dict(
        vocab=50, max_pos=16, type_vocab=2,
        bert_hidden=32, n_heads=4, n_layers=2, intermediate=64,
        head_hidden=16,        # config.hidden_size for fc1
        batch=2, seq=8,
    )

    key = jax.random.PRNGKey(0)
    k_par, k_ids, k_typ = jax.random.split(key, 3)

    params = init_params(k_par, cfg)

    B, S = cfg["batch"], cfg["seq"]
    input_ids = jax.random.randint(k_ids, (B, S), 0, cfg["vocab"], dtype=jnp.int32)
    token_type_ids = jax.random.randint(k_typ, (B, S), 0, cfg["type_vocab"],
                                        dtype=jnp.int32)
    attention_mask = jnp.ones((B, S), dtype=jnp.int32)
    attention_mask = attention_mask.at[1, 6:].set(0)   # some padding on example 1

    out = question_bert_forward(params, input_ids, token_type_ids,
                                attention_mask, cfg)
    out = jax.block_until_ready(out)
    assert out.shape == (B,), out.shape
    print("KERNEL_OK")
</pallas_src>

<mosaic_0001>
module attributes {stable_mosaic.version = 11 : i64} {
  func.func @_layernorm_kernel(%arg0: i32, %arg1: memref<16x32xf32, #tpu.memory_space<vmem>>, %arg2: memref<1x32xf32, #tpu.memory_space<vmem>>, %arg3: memref<1x32xf32, #tpu.memory_space<vmem>>, %arg4: memref<16x32xbf16, #tpu.memory_space<vmem>>) attributes {dimension_semantics = [#tpu.dimension_semantics<parallel>], iteration_bounds = array<i64: 1>, scalar_prefetch = 0 : i64, scratch_operands = 0 : i64, tpu.core_type = #tpu.core_type<tc>, window_params = [{transform_indices = @transform_0, window_bounds = array<i64: 16, 32>}, {pipeline_mode = #tpu.pipeline_mode<synchronous>, transform_indices = @transform_1, window_bounds = array<i64: 1, 32>}, {pipeline_mode = #tpu.pipeline_mode<synchronous>, transform_indices = @transform_2, window_bounds = array<i64: 1, 32>}, {transform_indices = @transform_3, window_bounds = array<i64: 16, 32>}]} {
    %c0 = arith.constant 0 : index
    %c0_0 = arith.constant 0 : index
    %0 = vector.load %arg1[%c0, %c0_0] : memref<16x32xf32, #tpu.memory_space<vmem>>, vector<16x32xf32>
    %cst = arith.constant dense<0.000000e+00> : vector<16xf32>
    %1 = vector.multi_reduction <add>, %0, %cst [1] : vector<16x32xf32> to vector<16xf32>
    %2 = vector.shape_cast %1 : vector<16xf32> to vector<16x1xf32>
    %cst_1 = arith.constant 3.200000e+01 : f32
    %3 = vector.broadcast %cst_1 : f32 to vector<16x1xf32>
    %4 = arith.divf %2, %3 : vector<16x1xf32>
    %5 = vector.broadcast %4 : vector<16x1xf32> to vector<16x32xf32>
    %6 = arith.subf %0, %5 : vector<16x32xf32>
    %7 = arith.mulf %6, %6 : vector<16x32xf32>
    %cst_2 = arith.constant dense<0.000000e+00> : vector<16xf32>
    %8 = vector.multi_reduction <add>, %7, %cst_2 [1] : vector<16x32xf32> to vector<16xf32>
    %9 = vector.shape_cast %8 : vector<16xf32> to vector<16x1xf32>
    %cst_3 = arith.constant 3.200000e+01 : f32
    %10 = vector.broadcast %cst_3 : f32 to vector<16x1xf32>
    %11 = arith.divf %9, %10 : vector<16x1xf32>
    %cst_4 = arith.constant 9.99999996E-13 : f32
    %12 = vector.broadcast %cst_4 : f32 to vector<16x1xf32>
    %13 = arith.addf %11, %12 : vector<16x1xf32>
    %14 = math.rsqrt %13 : vector<16x1xf32>
    %15 = vector.broadcast %14 : vector<16x1xf32> to vector<16x32xf32>
    %16 = arith.mulf %6, %15 : vector<16x32xf32>
    %c0_5 = arith.constant 0 : index
    %c0_6 = arith.constant 0 : index
    %17 = vector.load %arg2[%c0_5, %c0_6] : memref<1x32xf32, #tpu.memory_space<vmem>>, vector<1x32xf32>
    %18 = vector.broadcast %17 : vector<1x32xf32> to vector<16x32xf32>
    %19 = arith.mulf %16, %18 : vector<16x32xf32>
    %c0_7 = arith.constant 0 : index
    %c0_8 = arith.constant 0 : index
    %20 = vector.load %arg3[%c0_7, %c0_8] : memref<1x32xf32, #tpu.memory_space<vmem>>, vector<1x32xf32>
    %21 = vector.broadcast %20 : vector<1x32xf32> to vector<16x32xf32>
    %22 = arith.addf %19, %21 : vector<16x32xf32>
    %23 = arith.truncf %22 : vector<16x32xf32> to vector<16x32xbf16>
    %c0_9 = arith.constant 0 : index
    %c0_10 = arith.constant 0 : index
    %24 = vector.load %arg4[%c0_9, %c0_10] : memref<16x32xbf16, #tpu.memory_space<vmem>>, vector<16x32xbf16>
    tpu.vector_store %arg4[%c0_9, %c0_10], %23 {strides = array<i32>} : memref<16x32xbf16, #tpu.memory_space<vmem>>, vector<16x32xbf16>,
    return
  }
  func.func @transform_0(%arg0: i32) -> (i32, i32) {
    %c0_i32 = arith.constant 0 : i32
    %c0_i32_0 = arith.constant 0 : i32
    return %arg0, %c0_i32 : i32, i32
  }
  func.func @transform_1(%arg0: i32) -> (i32, i32) {
    %c0_i32 = arith.constant 0 : i32
    %c0_i32_0 = arith.constant 0 : i32
    %c0_i32_1 = arith.constant 0 : i32
    return %c0_i32, %c0_i32_0 : i32, i32
  }
  func.func @transform_2(%arg0: i32) -> (i32, i32) {
    %c0_i32 = arith.constant 0 : i32
    %c0_i32_0 = arith.constant 0 : i32
    %c0_i32_1 = arith.constant 0 : i32
    return %c0_i32, %c0_i32_0 : i32, i32
  }
  func.func @transform_3(%arg0: i32) -> (i32, i32) {
    %c0_i32 = arith.constant 0 : i32
    %c0_i32_0 = arith.constant 0 : i32
    return %arg0, %c0_i32 : i32, i32
  }
}

</mosaic_0001>

<llo_original>
// kernel: tpu_custom_call.1
$region0: #{tpu_custom_call.1}
  #allocation0 [shape = 'u32[]', space=smem, size = 0x4, offset = 0x4, fixed_abs, tag = 'smem constant byte address 0x4 - core index']
  #allocation1 [shape = 'u32[72,128]{1,0:T(1,128)}', space=vmem, size = 0x9000, scoped, tag = 'internal scratch']
  %s0 = inlined_call_operand.hbm [shape: f32[16,32], index: 0, kind: input, shape index: {}]
  %s1 = inlined_call_operand.hbm [shape: f32[1,32], index: 1, kind: input, shape index: {}]
  %s2 = inlined_call_operand.vmem [shape: f32[1,32], index: 2, kind: input, shape index: {}]
  %s3 = inlined_call_operand.hbm [shape: bf16[16,32], index: 3, kind: output, shape index: {}]
  %s4 = sld [smem:[#allocation0]]
  $region30: #{tpu_custom_call.1} parent=0
    _
  %s6 = ssub.s32 1, %s4
  %s7 = scalar_select 0, %s6, %s4
  $region1: #{tpu_custom_call.1} parent=0
    #allocation2 [shape = 'u8[8192]{0}', space=vmem, size = 0x2000, scoped, tag = 'input window, operand 0, single buffered']
    #allocation3 [shape = 's32[1]{0}', space=sflag, size = 0x4, scoped, tag = 'scoped memory for tpu_custom_call.1']
    #allocation4 [shape = 's32[1]{0}', space=sflag, size = 0x4, scoped, tag = 'scoped memory for tpu_custom_call.1']
    #allocation5 [shape = 'u8[512]{0}', space=vmem, size = 0x400, scoped, tag = 'input window, operand 1, single buffered']
    #allocation6 [shape = 's32[1]{0}', space=sflag, size = 0x4, scoped, tag = 'scoped memory for tpu_custom_call.1']
    #allocation7 [shape = 'u8[4096]{0}', space=vmem, size = 0x1000, scoped, tag = 'output window, operand 0, single buffered']
    %8 = vsyncpa [#allocation3], 0
    %9 = vsyncpa [#allocation6], 0
    %10 = vsyncpa [#allocation4], 0
    // Predicated region
    $region2: #{tpu_custom_call.1} parent=1 // pred_check
      _
    $region3: #{tpu_custom_call.1} parent=1 // pred_check_branch
      %12 = sbr.rel (0) target = $region5
    $region4: #{tpu_custom_call.1} parent=1 // pred_region
      %14 = vsyncadd [#allocation3], 0
      %s15 = sshll.u32 %s0, 4
      %s16 = int_to_ptr.hbm [resolvable:$true] %s15
      %s17 = sshll.u32 [#allocation2], 4
      %s18 = int_to_ptr.vmem [resolvable:$true] %s17
      %23 = dma.hbm_to_vmem [thread:$0]  %s16, 256, %s18, [#allocation3], 128, 128, 8
    $region5: #{tpu_custom_call.1} parent=1 // pred_fallthru
      _
    // Predicated region
    $region6: #{tpu_custom_call.1} parent=1 // pred_check
      _
    $region7: #{tpu_custom_call.1} parent=1 // pred_check_branch
      %25 = sbr.rel (0) target = $region9
    $region8: #{tpu_custom_call.1} parent=1 // pred_region
      %27 = vsyncadd [#allocation6], 0
      %s29 = sshll.u32 %s1, 4
      %s30 = int_to_ptr.hbm [resolvable:$true] %s29
      %s31 = sshll.u32 [#allocation5], 4
      %s32 = int_to_ptr.vmem [resolvable:$true] %s31
      %34 = dma.hbm_to_vmem [thread:$0]  %s30, 16, %s32, [#allocation6]
    $region9: #{tpu_custom_call.1} parent=1 // pred_fallthru
      _
    // Predicated region
    $region10: #{tpu_custom_call.1} parent=1 // pred_check
      _
    $region11: #{tpu_custom_call.1} parent=1 // pred_check_branch
      %36 = sbr.rel (0) target = $region13
    $region12: #{tpu_custom_call.1} parent=1 // pred_region
      _
    $region13: #{tpu_custom_call.1} parent=1 // pred_fallthru
      _
    // Predicated region
    $region14: #{tpu_custom_call.1} parent=1 // pred_check
      _
    $region15: #{tpu_custom_call.1} parent=1 // pred_check_branch
      %38 = sbr.rel (0) target = $region17
    $region16: #{tpu_custom_call.1} parent=1 // pred_region
      %40 = dma.done [#allocation3], 256
    $region17: #{tpu_custom_call.1} parent=1 // pred_fallthru
      _
    // Predicated region
    $region18: #{tpu_custom_call.1} parent=1 // pred_check
      _
    $region19: #{tpu_custom_call.1} parent=1 // pred_check_branch
      %42 = sbr.rel (0) target = $region21
    $region20: #{tpu_custom_call.1} parent=1 // pred_region
      %44 = dma.done [#allocation6], 16
    $region21: #{tpu_custom_call.1} parent=1 // pred_fallthru
      _
    %v45 = vld [vmem:[#allocation2] sm:$0xff]
    %v46 = vld [vmem:[#allocation2 + $0x8] sm:$0xff]
    %vm47 = vcmask 261120
    %v48 = vsel %vm47, %v45, 0.0
    %49 = vadd.xlane.f32.xlu0 %v48
    %v50 = vpop.xlane.xlu0 %49
    %v51 = vsel %vm47, %v46, 0.0
    %52 = vadd.xlane.f32.xlu0 %v51
    %v53 = vpop.xlane.xlu0 %52
    %v54 = vrcp.pop 32.0
    %v55 = vmul.f32 32.0, %v54
    %v56 = vsub.f32 1.0, %v55
    %v57 = vmul.f32 %v54, %v56
    %v58 = vadd.f32 %v54, %v57
    %vm59 = vweird.f32 %v54
    %v60 = vsel %vm59, %v54, %v58
    %v61 = vmul.f32 %v50, %v60
    %v62 = vmul.f32 %v53, %v60
    %v63 = vsub.f32 %v45, %v61
    %v64 = vsub.f32 %v46, %v62
    %v65 = vmul.f32 %v63, %v63
    %v66 = vmul.f32 %v64, %v64
    %v67 = vsel %vm47, %v65, 0.0
    %68 = vadd.xlane.f32.xlu0 %v67
    %v69 = vpop.xlane.xlu0 %68
    %v70 = vsel %vm47, %v66, 0.0
    %71 = vadd.xlane.f32.xlu0 %v70
    %v72 = vpop.xlane.xlu0 %71
    %v73 = vmul.f32 %v69, %v60
    %v74 = vmul.f32 %v72, %v60
    %v75 = vadd.f32 %v73, 1e-12
    %v76 = vadd.f32 %v74, 1e-12
    %v77 = vrsqrt.pop %v75
    %v78 = vmul.f32 %v77, %v75
    %v79 = vmul.f32 %v78, %v77
    %v80 = vmul.f32 0.5, %v79
    %v81 = vsub.f32 1.5, %v80
    %v82 = vmul.f32 %v77, %v81
    %vm83 = vweird.f32 %v75
    %vm84 = vweird.f32 %v77
    %vm85 = vmor %vm83, %vm84
    %v86 = vsel %vm85, %v77, %v82
    %v87 = vrsqrt.pop %v76
    %v88 = vmul.f32 %v87, %v76
    %v89 = vmul.f32 %v88, %v87
    %v90 = vmul.f32 0.5, %v89
    %v91 = vsub.f32 1.5, %v90
    %v92 = vmul.f32 %v87, %v91
    %vm93 = vweird.f32 %v76
    %vm94 = vweird.f32 %v87
    %vm95 = vmor %vm93, %vm94
    %v96 = vsel %vm95, %v87, %v92
    %v97 = vmul.f32 %v63, %v86
    %v98 = vmul.f32 %v64, %v96
    %v99 = vld [vmem:[#allocation5] sm:$0x1]
    %v101 = vperm.slane %v99, 0
    %v103 = vmul.f32 %v97, %v101
    %v104 = vmul.f32 %v98, %v101
    %v105 = vld [vmem:[%s2] sm:$0x1]
    %v107 = vperm.slane %v105, 0
    %v109 = vadd.f32 %v103, %v107
    %v110 = vadd.f32 %v104, %v107
    %v111 = vpack.c.bf16 %v109, %v109
    %v112 = vpack.c.bf16 %v110, %v110
    %vm113 = vcmask 257024
    %114 = vst.msk [vmem:[#allocation7] sm:$0xf] %vm113, %v111
    %115 = vst.msk [vmem:[#allocation7 + $0x4] sm:$0xf] %vm113, %v112
    // Predicated region
    $region22: #{tpu_custom_call.1} parent=1 // pred_check
      _
    $region23: #{tpu_custom_call.1} parent=1 // pred_check_branch
      %117 = sbr.rel (0) target = $region25
    $region24: #{tpu_custom_call.1} parent=1 // pred_region
      %119 = vsyncadd [#allocation4], 0
      %s120 = sshll.u32 [#allocation7], 4
      %s121 = int_to_ptr.vmem [resolvable:$true] %s120
      %s122 = sshll.u32 %s3, 4
      %s123 = int_to_ptr.hbm [resolvable:$true] %s122
      %128 = dma.vmem_to_hbm [thread:$0]  %s121, 128, %s123, [#allocation4], 64, 64, 4
    $region25: #{tpu_custom_call.1} parent=1 // pred_fallthru
      _
    // Predicated region
    $region26: #{tpu_custom_call.1} parent=1 // pred_check
      _
    $region27: #{tpu_custom_call.1} parent=1 // pred_check_branch
      %130 = sbr.rel (0) target = $region29
    $region28: #{tpu_custom_call.1} parent=1 // pred_region
      %132 = dma.done [#allocation4], 128
    $region29: #{tpu_custom_call.1} parent=1 // pred_fallthru
      _
    %133 = vsyncpa [#allocation3], 1
    %134 = vsyncpa [#allocation6], 1
    %135 = vsyncpa [#allocation4], 1

</llo_original>
